<compile_context>
chip_gen: v7x
topology: tpu7x:2x2x1
jax: 0.10.0
libtpu: 0.0.40
codegen_flags: <defaults>
</compile_context>

<pallas_src>
import functools

import jax
import jax.numpy as jnp
from jax.experimental import pallas as pl
from jax.experimental.pallas import tpu as pltpu

LANE = 128  # lane width / MXU tile alignment


# ---------------------------------------------------------------------------
# Fused kernel: grid = (num_layers, num_row_tiles)
#   Both axes carry sequential deps through VMEM scratch (xw shared across row
#   tiles, activation slabs shared across layers) -> "arbitrary"/"arbitrary".
# ---------------------------------------------------------------------------
def _gcn_fused_kernel(a_ref, x_hbm, w_ref, b_ref, o_hbm,
                      h_ref, xw_ref, out_ref, sem,
                      *, tm, num_layers, a_resident):
    l = pl.program_id(0)          # layer index
    r = pl.program_id(1)          # row-tile index of A_hat / output
    last = num_layers - 1
    row = pl.multiple_of(r * tm, tm)   # tm is a multiple of 128

    # Load the (padded, bf16) input features from HBM into slab 0 exactly once.
    @pl.when((l == 0) & (r == 0))
    def _():
        cp = pltpu.make_async_copy(x_hbm, h_ref.at[0], sem.at[0])
        cp.start()
        cp.wait()

    # Ping-pong activation slabs: layer l reads slab (l % 2), writes ((l+1) % 2).
    src = l % 2
    dst = (l + 1) % 2

    # Feature transform XW = H_l @ W_l, computed ONCE per layer (first row tile).
    @pl.when(r == 0)
    def _():
        xw = jnp.dot(h_ref[src], w_ref[0], preferred_element_type=jnp.float32)
        xw_ref[...] = xw.astype(xw_ref.dtype)

    # Neighborhood aggregation for this row tile: A_hat[rows] @ XW, then bias.
    if a_resident:
        a_tile = a_ref[pl.ds(row, tm), :]      # slice the VMEM-resident A_hat
    else:
        a_tile = a_ref[...]                    # streamed (tm, n_pad) tile
    out = jnp.dot(a_tile, xw_ref[...], preferred_element_type=jnp.float32)
    out = out + b_ref[0]

    # ReLU'd bf16 activations feed the next layer; skipped after the last layer.
    # NOTE: padded node rows carry bias/ReLU garbage here, but A_hat's padded
    # source columns are zero so it never contaminates real rows, and the final
    # output is sliced back to (n, num_classes).
    @pl.when(l < last)
    def _():
        h_ref[dst, pl.ds(row, tm), :] = jnp.maximum(out, 0.0).astype(h_ref.dtype)

    # Only the last layer's (non-ReLU'd) tile is DMA'd to the HBM output.
    @pl.when(l == last)
    def _():
        out_ref[...] = out.astype(out_ref.dtype)
        cp = pltpu.make_async_copy(out_ref, o_hbm.at[pl.ds(row, tm), :], sem.at[1])
        cp.start()
        cp.wait()


def _physical_vmem_bytes():
    try:
        return int(pltpu.get_tpu_info().vmem_capacity_bytes)
    except Exception:
        return 64 * 1024 * 1024  # conservative (v7x per-TC VMEM)


def _gcn_stack(a_p, x_p, w_all, b_all, *, n_pad, f_pad, num_layers):
    """One pallas_call running every GCN layer; returns padded (n_pad, f_pad) output."""
    BF16, F32 = 2, 4
    phys_vmem = _physical_vmem_bytes()
    budget = int(phys_vmem * 0.75)  # leave headroom for compiler-internal scratch

    # VMEM that is always there (activation ping-pong, XW, double-buffered W, b).
    base = (2 * n_pad * f_pad * BF16        # h_ref (2, n_pad, f_pad)
            + n_pad * f_pad * BF16          # xw_ref
            + 2 * f_pad * f_pad * BF16      # W block (double-buffered)
            + 2 * f_pad * F32)              # b block

    # Can the full A_hat stay resident (conservatively count 2 buffers)?
    a_full_bytes = 2 * n_pad * n_pad * BF16
    a_resident = (base + a_full_bytes + LANE * f_pad * F32) <= budget

    if a_resident:
        # tm only sets the aggregation-matmul granularity; keep it as large as divides.
        tm = next(c for c in (512, 256, 128) if n_pad % c == 0)
        a_vmem_bytes = a_full_bytes
    else:
        tm = 128
        for c in (1024, 512, 256, 128):
            if n_pad % c == 0 and base + 2 * c * n_pad * BF16 + c * f_pad * F32 <= budget:
                tm = c
                break
        a_vmem_bytes = 2 * tm * n_pad * BF16

    out_tile_bytes = tm * f_pad * F32
    vmem_limit = int(min(phys_vmem,
                         max(32 * 1024 * 1024,
                             base + a_vmem_bytes + out_tile_bytes + 8 * 1024 * 1024)))
    n_row_tiles = n_pad // tm

    if a_resident:
        a_spec = pl.BlockSpec((n_pad, n_pad), lambda l, r: (0, 0))   # fetched once
    else:
        a_spec = pl.BlockSpec((tm, n_pad), lambda l, r: (r, 0))      # streamed per layer

    kernel = functools.partial(_gcn_fused_kernel, tm=tm,
                               num_layers=num_layers, a_resident=a_resident)

    flops = num_layers * (2 * n_pad * f_pad * f_pad + 2 * n_pad * n_pad * f_pad)
    a_reads = 1 if a_resident else num_layers
    bytes_accessed = (a_p.size * BF16 * a_reads   # A_hat
                      + x_p.size * BF16           # X, once
                      + w_all.size * BF16         # all layer weights
                      + b_all.size * F32
                      + n_pad * f_pad * F32)      # final output, once

    return pl.pallas_call(
        kernel,
        out_shape=jax.ShapeDtypeStruct((n_pad, f_pad), jnp.float32),
        grid_spec=pltpu.PrefetchScalarGridSpec(
            num_scalar_prefetch=0,
            grid=(num_layers, n_row_tiles),
            in_specs=[
                a_spec,                                                # A_hat
                pl.BlockSpec(memory_space=pl.ANY),                     # X (raw HBM)
                pl.BlockSpec((1, f_pad, f_pad), lambda l, r: (l, 0, 0)),  # W_l
                pl.BlockSpec((1, 1, f_pad), lambda l, r: (l, 0, 0)),   # b_l
            ],
            out_specs=pl.BlockSpec(memory_space=pl.ANY),               # manual DMA out
            scratch_shapes=[
                pltpu.VMEM((2, n_pad, f_pad), jnp.bfloat16),  # ping-pong activations
                pltpu.VMEM((n_pad, f_pad), jnp.bfloat16),     # XW of the current layer
                pltpu.VMEM((tm, f_pad), jnp.float32),         # f32 output tile
                pltpu.SemaphoreType.DMA((2,)),                # X-load / output DMAs
            ],
        ),
        compiler_params=pltpu.CompilerParams(
            # Both axes carry a sequential dependency through the VMEM scratch.
            dimension_semantics=("arbitrary", "arbitrary"),
            vmem_limit_bytes=vmem_limit,
        ),
        cost_estimate=pl.CostEstimate(
            flops=flops, transcendentals=0, bytes_accessed=bytes_accessed),
    )(a_p, x_p, w_all, b_all)


# ---------------------------------------------------------------------------
# Glue: dense gcn_norm adjacency (add_remaining_self_loops, symmetric norm).
# ---------------------------------------------------------------------------
def build_normalized_adjacency(edge_index, num_nodes):
    row, col = edge_index[0], edge_index[1]          # edges: row (src) -> col (dst)
    w = jnp.ones(row.shape[0], jnp.float32)          # edge_weight=None -> all ones
    # add_remaining_self_loops: append a unit self-loop only for nodes without one.
    has_loop = (jnp.zeros((num_nodes,), jnp.float32)
                .at[row].add(jnp.where(row == col, 1.0, 0.0))) > 0
    loop = jnp.arange(num_nodes, dtype=row.dtype)
    loop_w = jnp.where(has_loop, 0.0, 1.0)
    row = jnp.concatenate([row, loop])
    col = jnp.concatenate([col, loop])
    w = jnp.concatenate([w, loop_w])
    # degree on target nodes, symmetric normalization
    deg = jnp.zeros((num_nodes,), jnp.float32).at[col].add(w)
    dinv = jnp.where(deg > 0, jax.lax.rsqrt(jnp.maximum(deg, 1e-12)), 0.0)
    norm = dinv[row] * w * dinv[col]
    # aggregation at target: out[col] += norm * x[row]  ->  A_hat[col, row] = norm
    return jnp.zeros((num_nodes, num_nodes), jnp.float32).at[col, row].add(norm)


def _round_up(v, m):
    return (v + m - 1) // m * m


def _pad2d(a, rows, cols):
    return jnp.pad(a, ((0, rows - a.shape[0]), (0, cols - a.shape[1])))


# ---------------------------------------------------------------------------
# Full GCN forward (num_layers GCNConv, Identity norm, ReLU between layers,
# inference-mode dropout == identity).
# ---------------------------------------------------------------------------
def gcn_forward(x, edge_index, params, num_layers):
    # TODO(synk): dropout omitted — module evaluated with training=False (identity).
    # TODO(synk): dense A_hat suits small graphs; large/sparse graphs need a
    #             scalar-prefetch CSR aggregation kernel instead of N x N matmuls.
    n, in_dim = x.shape
    num_classes = params[-1][0].shape[1]
    a_hat = build_normalized_adjacency(edge_index, n)

    dims = [in_dim] + [w.shape[1] for (w, _) in params]
    f_pad = max(_round_up(d, LANE) for d in dims)
    n_pad = _round_up(n, LANE)

    # Lane-dense, bf16 MXU operands (padding with zeros is exact for this math).
    a_p = _pad2d(a_hat, n_pad, n_pad).astype(jnp.bfloat16)
    x_p = _pad2d(x, n_pad, f_pad).astype(jnp.bfloat16)
    w_all = jnp.stack([_pad2d(w, f_pad, f_pad) for (w, _) in params]).astype(jnp.bfloat16)
    b_all = jnp.stack([jnp.pad(b, (0, f_pad - b.shape[0])).reshape(1, f_pad)
                       for (_, b) in params]).astype(jnp.float32)

    out_p = _gcn_stack(a_p, x_p, w_all, b_all,
                       n_pad=n_pad, f_pad=f_pad, num_layers=num_layers)
    return out_p[:n, :num_classes]


def init_params(key, num_layers, input_dim, hidden_dim, num_classes):
    """Deterministic glorot-ish init for each GCNConv's linear weight; zero bias."""
    if num_layers == 1:
        dims = [input_dim, num_classes]
    else:
        dims = [input_dim] + [hidden_dim] * (num_layers - 1) + [num_classes]
    params = []
    for i in range(num_layers):
        din, dout = dims[i], dims[i + 1]
        key, sub = jax.random.split(key)
        scale = jnp.sqrt(6.0 / (din + dout))
        w = jax.random.uniform(sub, (din, dout), jnp.float32, -scale, scale)
        b = jnp.zeros((dout,), jnp.float32)
        params.append((w, b))
    return params


if __name__ == "__main__":
    key = jax.random.PRNGKey(0)

    # small synthetic graph
    num_nodes = 64
    num_edges = 256
    input_dim = 32
    hidden_dim = 32
    num_classes = 8
    num_layers = 2

    k1, k2, k3 = jax.random.split(key, 3)
    x = jax.random.normal(k1, (num_nodes, input_dim), jnp.float32)
    src = jax.random.randint(k2, (num_edges,), 0, num_nodes, jnp.int32)
    dst = jax.random.randint(k3, (num_edges,), 0, num_nodes, jnp.int32)
    edge_index = jnp.stack([src, dst], axis=0)  # [2, E]

    params = init_params(jax.random.PRNGKey(42), num_layers,
                         input_dim, hidden_dim, num_classes)

    out = gcn_forward(x, edge_index, params, num_layers)
    out = jax.block_until_ready(out)

    # pure-JAX reference of the same math (mirrors the kernel's bf16 MXU casts).
    a_hat = build_normalized_adjacency(edge_index, num_nodes)
    a_bf = a_hat.astype(jnp.bfloat16)
    h_ref = x
    for i in range(num_layers):
        w, b = params[i]
        xw = jnp.dot(h_ref.astype(jnp.bfloat16), w.astype(jnp.bfloat16),
                     preferred_element_type=jnp.float32)
        o = jnp.dot(a_bf, xw.astype(jnp.bfloat16),
                    preferred_element_type=jnp.float32) + b[None, :]
        h_ref = jnp.maximum(o, 0.0) if i != num_layers - 1 else o

    assert out.shape == (num_nodes, num_classes)
    assert jnp.allclose(out, h_ref, rtol=1e-2, atol=1e-2), (
        float(jnp.max(jnp.abs(out - h_ref))))

    print("KERNEL_OK")
</pallas_src>

<mosaic_0001>
module attributes {stable_mosaic.version = 11 : i64} {
  func.func @_gcn_fused_kernel(%arg0: i32, %arg1: i32, %arg2: memref<128x128xbf16, #tpu.memory_space<vmem>>, %arg3: memref<128x128xbf16, #tpu.memory_space<any>>, %arg4: memref<1x128x128xbf16, #tpu.memory_space<vmem>>, %arg5: memref<1x1x128xf32, #tpu.memory_space<vmem>>, %arg6: memref<128x128xf32, #tpu.memory_space<any>>, %arg7: memref<2x128x128xbf16, #tpu.memory_space<vmem>>, %arg8: memref<128x128xbf16, #tpu.memory_space<vmem>>, %arg9: memref<128x128xf32, #tpu.memory_space<vmem>>, %arg10: memref<2x!tpu.dma_semaphore, #tpu.memory_space<semaphore_mem>>) attributes {dimension_semantics = [#tpu.dimension_semantics<arbitrary>, #tpu.dimension_semantics<arbitrary>], iteration_bounds = array<i64: 2, 1>, scalar_prefetch = 0 : i64, scratch_operands = 4 : i64, tpu.core_type = #tpu.core_type<tc>, window_params = [{pipeline_mode = #tpu.pipeline_mode<synchronous>, transform_indices = @transform_0, window_bounds = array<i64: 128, 128>}, {}, {transform_indices = @transform_2, window_bounds = array<i64: 1, 128, 128>}, {transform_indices = @transform_3, window_bounds = array<i64: 1, 1, 128>}, {}]} {
    %c128_i32 = arith.constant 128 : i32
    %0 = arith.muli %arg1, %c128_i32 : i32
    %1 = tpu.assume_multiple %0, 128 : i32
    %c0_i32 = arith.constant 0 : i32
    %2 = arith.cmpi eq, %arg0, %c0_i32 : i32
    %c0_i32_0 = arith.constant 0 : i32
    %3 = arith.cmpi eq, %arg1, %c0_i32_0 : i32
    %4 = arith.andi %2, %3 : i1
    %5 = arith.extui %4 : i1 to i32
    %c0_i32_1 = arith.constant 0 : i32
    %6 = arith.cmpi ne, %5, %c0_i32_1 : i32
    scf.if %6 {
      %c0_i32_24 = arith.constant 0 : i32
      %c0_i32_25 = arith.constant 0 : i32
      %c0_i32_26 = arith.constant 0 : i32
      %c0_i32_27 = arith.constant 0 : i32
      %45 = tpu.memref_slice %arg7[%c0_i32_24, %c0_i32_26, %c0_i32_27] : memref<2x128x128xbf16, #tpu.memory_space<vmem>> -> memref<1x128x128xbf16, #tpu.memory_space<vmem>>
      %46 = tpu.memref_squeeze %45 : memref<1x128x128xbf16, #tpu.memory_space<vmem>> -> memref<128x128xbf16, #tpu.memory_space<vmem>>
      %47 = tpu.memref_slice %arg10[%c0_i32_25] : memref<2x!tpu.dma_semaphore, #tpu.memory_space<semaphore_mem>> -> memref<1x!tpu.dma_semaphore, #tpu.memory_space<semaphore_mem>>
      %48 = tpu.memref_squeeze %47 : memref<1x!tpu.dma_semaphore, #tpu.memory_space<semaphore_mem>> -> memref<!tpu.dma_semaphore, #tpu.memory_space<semaphore_mem>>
      tpu.enqueue_dma source(%arg3 : memref<128x128xbf16, #tpu.memory_space<any>>) target(%46 : memref<128x128xbf16, #tpu.memory_space<vmem>>) target_semaphore(%48 : memref<!tpu.dma_semaphore, #tpu.memory_space<semaphore_mem>>)
      %c0_i32_28 = arith.constant 0 : i32
      %c0_i32_29 = arith.constant 0 : i32
      %c0_i32_30 = arith.constant 0 : i32
      %c0_i32_31 = arith.constant 0 : i32
      %49 = tpu.memref_slice %arg7[%c0_i32_28, %c0_i32_30, %c0_i32_31] : memref<2x128x128xbf16, #tpu.memory_space<vmem>> -> memref<1x128x128xbf16, #tpu.memory_space<vmem>>
      %50 = tpu.memref_squeeze %49 : memref<1x128x128xbf16, #tpu.memory_space<vmem>> -> memref<128x128xbf16, #tpu.memory_space<vmem>>
      %51 = tpu.memref_slice %arg10[%c0_i32_29] : memref<2x!tpu.dma_semaphore, #tpu.memory_space<semaphore_mem>> -> memref<1x!tpu.dma_semaphore, #tpu.memory_space<semaphore_mem>>
      %52 = tpu.memref_squeeze %51 : memref<1x!tpu.dma_semaphore, #tpu.memory_space<semaphore_mem>> -> memref<!tpu.dma_semaphore, #tpu.memory_space<semaphore_mem>>
      tpu.wait_dma2 semaphore(%52 : memref<!tpu.dma_semaphore, #tpu.memory_space<semaphore_mem>>) src(%arg3 : memref<128x128xbf16, #tpu.memory_space<any>>) dst(%50 : memref<128x128xbf16, #tpu.memory_space<vmem>>)
    } else {
    }
    %c2_i32 = arith.constant 2 : i32
    %c0_i32_2 = arith.constant 0 : i32
    %7 = arith.cmpi eq, %c2_i32, %c0_i32_2 : i32
    %c1_i32 = arith.constant 1 : i32
    %8 = arith.select %7, %c1_i32, %c2_i32 : i32
    %9 = arith.remsi %arg0, %8 : i32
    %c0_i32_3 = arith.constant 0 : i32
    %10 = arith.cmpi ne, %9, %c0_i32_3 : i32
    %c0_i32_4 = arith.constant 0 : i32
    %11 = arith.cmpi slt, %9, %c0_i32_4 : i32
    %c0_i32_5 = arith.constant 0 : i32
    %12 = arith.cmpi slt, %8, %c0_i32_5 : i32
    %13 = arith.xori %11, %12 : i1
    %14 = arith.andi %13, %10 : i1
    %15 = arith.addi %9, %8 : i32
    %16 = arith.select %14, %15, %9 : i32
    %c1_i32_6 = arith.constant 1 : i32
    %17 = arith.addi %arg0, %c1_i32_6 : i32
    %c2_i32_7 = arith.constant 2 : i32
    %c0_i32_8 = arith.constant 0 : i32
    %18 = arith.cmpi eq, %c2_i32_7, %c0_i32_8 : i32
    %c1_i32_9 = arith.constant 1 : i32
    %19 = arith.select %18, %c1_i32_9, %c2_i32_7 : i32
    %20 = arith.remsi %17, %19 : i32
    %c0_i32_10 = arith.constant 0 : i32
    %21 = arith.cmpi ne, %20, %c0_i32_10 : i32
    %c0_i32_11 = arith.constant 0 : i32
    %22 = arith.cmpi slt, %20, %c0_i32_11 : i32
    %c0_i32_12 = arith.constant 0 : i32
    %23 = arith.cmpi slt, %19, %c0_i32_12 : i32
    %24 = arith.xori %22, %23 : i1
    %25 = arith.andi %24, %21 : i1
    %26 = arith.addi %20, %19 : i32
    %27 = arith.select %25, %26, %20 : i32
    %c0_i32_13 = arith.constant 0 : i32
    %28 = arith.cmpi eq, %arg1, %c0_i32_13 : i32
    %29 = arith.extui %28 : i1 to i32
    %c0_i32_14 = arith.constant 0 : i32
    %30 = arith.cmpi ne, %29, %c0_i32_14 : i32
    scf.if %30 {
      %45 = arith.index_cast %16 : i32 to index
      %c0_24 = arith.constant 0 : index
      %c0_25 = arith.constant 0 : index
      %46 = vector.load %arg7[%45, %c0_24, %c0_25] : memref<2x128x128xbf16, #tpu.memory_space<vmem>>, vector<1x128x128xbf16>
      %47 = vector.shape_cast %46 : vector<1x128x128xbf16> to vector<128x128xbf16>
      %c0_26 = arith.constant 0 : index
      %c0_27 = arith.constant 0 : index
      %c0_28 = arith.constant 0 : index
      %48 = vector.load %arg4[%c0_26, %c0_27, %c0_28] : memref<1x128x128xbf16, #tpu.memory_space<vmem>>, vector<1x128x128xbf16>
      %49 = vector.shape_cast %48 : vector<1x128x128xbf16> to vector<128x128xbf16>
      %cst_29 = arith.constant dense<0.000000e+00> : vector<128x128xf32>
      %50 = tpu.matmul %47, %49, %cst_29 {dimension_numbers = #tpu.dot_dimension_numbers<[1], [0], [0], [1], [0, 0, 1, 1], [], []>} : vector<128x128xbf16>, vector<128x128xbf16>, vector<128x128xf32> -> vector<128x128xf32>
      %51 = arith.truncf %50 : vector<128x128xf32> to vector<128x128xbf16>
      %c0_30 = arith.constant 0 : index
      %c0_31 = arith.constant 0 : index
      %52 = vector.load %arg8[%c0_30, %c0_31] : memref<128x128xbf16, #tpu.memory_space<vmem>>, vector<128x128xbf16>
      tpu.vector_store %arg8[%c0_30, %c0_31], %51 {strides = array<i32>} : memref<128x128xbf16, #tpu.memory_space<vmem>>, vector<128x128xbf16>,
    } else {
    }
    %31 = arith.index_cast %1 : i32 to index
    %c0 = arith.constant 0 : index
    %32 = vector.load %arg2[%31, %c0] : memref<128x128xbf16, #tpu.memory_space<vmem>>, vector<128x128xbf16>
    %c0_15 = arith.constant 0 : index
    %c0_16 = arith.constant 0 : index
    %33 = vector.load %arg8[%c0_15, %c0_16] : memref<128x128xbf16, #tpu.memory_space<vmem>>, vector<128x128xbf16>
    %cst = arith.constant dense<0.000000e+00> : vector<128x128xf32>
    %34 = tpu.matmul %32, %33, %cst {dimension_numbers = #tpu.dot_dimension_numbers<[1], [0], [0], [1], [0, 0, 1, 1], [], []>} : vector<128x128xbf16>, vector<128x128xbf16>, vector<128x128xf32> -> vector<128x128xf32>
    %c0_17 = arith.constant 0 : index
    %c0_18 = arith.constant 0 : index
    %c0_19 = arith.constant 0 : index
    %35 = vector.load %arg5[%c0_17, %c0_18, %c0_19] : memref<1x1x128xf32, #tpu.memory_space<vmem>>, vector<1x1x128xf32>
    %36 = vector.shape_cast %35 : vector<1x1x128xf32> to vector<1x128xf32>
    %37 = vector.broadcast %36 : vector<1x128xf32> to vector<128x128xf32>
    %38 = arith.addf %34, %37 : vector<128x128xf32>
    %c1_i32_20 = arith.constant 1 : i32
    %39 = arith.cmpi slt, %arg0, %c1_i32_20 : i32
    %40 = arith.extui %39 : i1 to i32
    %c0_i32_21 = arith.constant 0 : i32
    %41 = arith.cmpi ne, %40, %c0_i32_21 : i32
    scf.if %41 {
      %cst_24 = arith.constant 0.000000e+00 : f32
      %45 = vector.broadcast %cst_24 : f32 to vector<128x128xf32>
      %46 = arith.maximumf %38, %45 : vector<128x128xf32>
      %47 = arith.truncf %46 : vector<128x128xf32> to vector<128x128xbf16>
      %48 = arith.index_cast %27 : i32 to index
      %49 = arith.index_cast %1 : i32 to index
      %c0_25 = arith.constant 0 : index
      %50 = vector.load %arg7[%48, %49, %c0_25] : memref<2x128x128xbf16, #tpu.memory_space<vmem>>, vector<1x128x128xbf16>
      %51 = vector.shape_cast %50 : vector<1x128x128xbf16> to vector<128x128xbf16>
      %52 = vector.shape_cast %47 : vector<128x128xbf16> to vector<1x128x128xbf16>
      tpu.vector_store %arg7[%48, %49, %c0_25], %52 {strides = array<i32>} : memref<2x128x128xbf16, #tpu.memory_space<vmem>>, vector<1x128x128xbf16>,
    } else {
    }
    %c1_i32_22 = arith.constant 1 : i32
    %42 = arith.cmpi eq, %arg0, %c1_i32_22 : i32
    %43 = arith.extui %42 : i1 to i32
    %c0_i32_23 = arith.constant 0 : i32
    %44 = arith.cmpi ne, %43, %c0_i32_23 : i32
    scf.if %44 {
      %c0_24 = arith.constant 0 : index
      %c0_25 = arith.constant 0 : index
      %45 = vector.load %arg9[%c0_24, %c0_25] : memref<128x128xf32, #tpu.memory_space<vmem>>, vector<128x128xf32>
      tpu.vector_store %arg9[%c0_24, %c0_25], %38 {strides = array<i32>} : memref<128x128xf32, #tpu.memory_space<vmem>>, vector<128x128xf32>,
      %c1_i32_26 = arith.constant 1 : i32
      %c0_i32_27 = arith.constant 0 : i32
      %46 = tpu.memref_slice %arg6[%1, %c0_i32_27] : memref<128x128xf32, #tpu.memory_space<any>> -> memref<128x128xf32, #tpu.memory_space<any>>
      %47 = tpu.memref_slice %arg10[%c1_i32_26] : memref<2x!tpu.dma_semaphore, #tpu.memory_space<semaphore_mem>> -> memref<1x!tpu.dma_semaphore, #tpu.memory_space<semaphore_mem>>
      %48 = tpu.memref_squeeze %47 : memref<1x!tpu.dma_semaphore, #tpu.memory_space<semaphore_mem>> -> memref<!tpu.dma_semaphore, #tpu.memory_space<semaphore_mem>>
      tpu.enqueue_dma source(%arg9 : memref<128x128xf32, #tpu.memory_space<vmem>>) target(%46 : memref<128x128xf32, #tpu.memory_space<any>>) target_semaphore(%48 : memref<!tpu.dma_semaphore, #tpu.memory_space<semaphore_mem>>)
      %c1_i32_28 = arith.constant 1 : i32
      %c0_i32_29 = arith.constant 0 : i32
      %49 = tpu.memref_slice %arg6[%1, %c0_i32_29] : memref<128x128xf32, #tpu.memory_space<any>> -> memref<128x128xf32, #tpu.memory_space<any>>
      %50 = tpu.memref_slice %arg10[%c1_i32_28] : memref<2x!tpu.dma_semaphore, #tpu.memory_space<semaphore_mem>> -> memref<1x!tpu.dma_semaphore, #tpu.memory_space<semaphore_mem>>
      %51 = tpu.memref_squeeze %50 : memref<1x!tpu.dma_semaphore, #tpu.memory_space<semaphore_mem>> -> memref<!tpu.dma_semaphore, #tpu.memory_space<semaphore_mem>>
      tpu.wait_dma2 semaphore(%51 : memref<!tpu.dma_semaphore, #tpu.memory_space<semaphore_mem>>) src(%arg9 : memref<128x128xf32, #tpu.memory_space<vmem>>) dst(%49 : memref<128x128xf32, #tpu.memory_space<any>>)
    } else {
    }
    return
  }
  func.func @transform_0(%arg0: i32, %arg1: i32) -> (i32, i32) {
    %c0_i32 = arith.constant 0 : i32
    %c0_i32_0 = arith.constant 0 : i32
    %c0_i32_1 = arith.constant 0 : i32
    return %c0_i32, %c0_i32_0 : i32, i32
  }
  func.func @transform_2(%arg0: i32, %arg1: i32) -> (i32, i32, i32) {
    %c0_i32 = arith.constant 0 : i32
    %c0_i32_0 = arith.constant 0 : i32
    %c0_i32_1 = arith.constant 0 : i32
    return %arg0, %c0_i32, %c0_i32_0 : i32, i32, i32
  }
  func.func @transform_3(%arg0: i32, %arg1: i32) -> (i32, i32, i32) {
    %c0_i32 = arith.constant 0 : i32
    %c0_i32_0 = arith.constant 0 : i32
    %c0_i32_1 = arith.constant 0 : i32
    return %arg0, %c0_i32, %c0_i32_0 : i32, i32, i32
  }
}

</mosaic_0001>

<llo_original>
// kernel: tpu_custom_call.1
$region0: #{tpu_custom_call.1}
  #allocation0 [shape = 'u32[]', space=smem, size = 0x4, offset = 0x4, fixed_abs, tag = 'smem constant byte address 0x4 - core index']
  #allocation1 [shape = 'u32[144,128]{1,0:T(1,128)}', space=vmem, size = 0x12000, scoped, tag = 'internal scratch']
  #allocation2 [shape = 'bf16[2,128,128]{2,1,0:T(16,128)(2,1)}', space=vmem, size = 0x10000, scoped, tag = 'scratch operand']
  #allocation3 [shape = 'bf16[128,128]{1,0:T(16,128)(2,1)}', space=vmem, size = 0x8000, scoped, tag = 'scratch operand']
  #allocation4 [shape = 'f32[128,128]{1,0:T(8,128)}', space=vmem, size = 0x10000, scoped, tag = 'scratch operand']
  #allocation5 [shape = 's32[2]{0}', space=sflag, size = 0x8, scoped, tag = 'scratch operand']
  #allocation10 [shape = 's32[]', space=sflag, size = 0x4, offset = 0, fixed_abs, tag = 'sflag constant byte address 0x0 - dummy sync flag']
  #allocation11 [shape = 's32[]', space=sflag, size = 0x4, offset = 0, fixed_abs, tag = 'sflag constant byte address 0x0 - dummy sync flag']
  #allocation12 [shape = 'u32[]', space=smem, size = 0x4, offset = 0x44, fixed_abs, tag = 'smem constant byte address 0x44 - assertion arg 0']
  #allocation13 [shape = 'u32[]', space=smem, size = 0x4, offset = 0x48, fixed_abs, tag = 'smem constant byte address 0x48 - assertion arg 1']
  #allocation14 [shape = 's32[]', space=sflag, size = 0x4, offset = 0, fixed_abs, tag = 'sflag constant byte address 0x0 - dummy sync flag']
  #allocation15 [shape = 's32[]', space=sflag, size = 0x4, offset = 0, fixed_abs, tag = 'sflag constant byte address 0x0 - dummy sync flag']
  %s0 = inlined_call_operand.hbm [shape: bf16[128,128], index: 0, kind: input, shape index: {}]
  %s1 = inlined_call_operand.hbm [shape: bf16[128,128], index: 1, kind: input, shape index: {}]
  %s2 = inlined_call_operand.hbm [shape: bf16[2,128,128], index: 2, kind: input, shape index: {}]
  %s3 = inlined_call_operand.vmem [shape: f32[2,1,128], index: 3, kind: input, shape index: {}]
  %s4 = inlined_call_operand.hbm [shape: f32[128,128], index: 4, kind: output, shape index: {}]
  %s5 = sld [smem:[#allocation0]]
  $region65: #{tpu_custom_call.1} parent=0
    _
  %s7 = ssub.s32 1, %s5
  %s8 = scalar_select 0, %s7, %s5
  $region1: #{tpu_custom_call.1} parent=0
    #allocation6 [shape = 'u8[32768]{0}', space=vmem, size = 0x8000, scoped, tag = 'input window, operand 0, single buffered']
    #allocation7 [shape = 's32[2]{0}', space=sflag, size = 0x8, scoped, tag = 'scoped memory for tpu_custom_call.1']
    #allocation8 [shape = 'u8[65536]{0}', space=vmem, size = 0x10000, scoped, tag = 'input window, operand 2']
    #allocation9 [shape = 's32[2]{0}', space=sflag, size = 0x8, scoped, tag = 'scoped memory for tpu_custom_call.1']
    %9 = vsyncpa [#allocation7], 0
    %10 = vsyncpa [#allocation9], 0
    %s11 = scalar_lea.sflag [#allocation9], 1
    %12 = vsyncpa %s11, 0
    loop: start=0, step=1, limit=3
    $region2: #{tpu_custom_call.1} parent=1 // loop_pre_header
      _
    $region3: #{tpu_custom_call.1} parent=1 // loop_header
      %s14 = sphi 0, %s18
      %p15 = scmp.ge.s32.totalorder %s14, 3
      %s20 = sphi 0, %s30
      %s21 = sphi 0, %s26
      %s22 = sphi 0, %s20
      %s23 = sphi 0, %s21
      %s31 = sphi 0, %s31
      %s33 = sphi 0, %s31
      %s41 = sphi 0, %s33
      %s47 = sphi 0, %s49
      %s50 = sphi 0, %s47
      %s60 = sphi 0, %s50
      %s66 = sphi 0, %s68
      %s69 = sphi 0, %s66
      %s79 = sphi 0, %s69
    $region4: #{tpu_custom_call.1} parent=1 // loop_header_branch
      %17 = sbr.rel (%p15) target = $region8
    $region5: #{tpu_custom_call.1} parent=1 // loop_body
      %s19 = ssub.s32 %s14, 1
      %s24 = sadd.s32 1, %s21
      %p25 = scmp.ge.s32.totalorder %s24, 1
      %s26 = scalar_select %p25, 0, %s24
      %s27 = sadd.s32 1, %s20
      %s28 = scalar_select %p25, %s27, %s20
      %p29 = scmp.ge.s32.totalorder %s28, 2
      %s30 = scalar_select %p29, 0, %s28
      %s32 = sadd.s32 %s31, 1
      %p34 = scmp.eq.s32.totalorder %s14, 1
      %p35 = scmp.ne.s32.totalorder %s31, %s33
      %p36 = scmp.eq.s32.totalorder %s14, 0
      %p37 = por %p35, %p36
      %p38 = scmp.ne.s32.totalorder %s31, %s33
      %p39 = scmp.eq.s32.totalorder %s19, 1
      %p40 = por %p38, %p39
      %p42 = scmp.ne.s32.totalorder %s33, %s41
      %p43 = scmp.eq.s32.totalorder %s19, 0
      %p44 = por %p42, %p43
      %s45 = ssub.s32 %s20, %s30
      %p46 = scmp.eq.s32.totalorder %s45, 0
      %s48 = sadd.s32 %s47, 1
      %s49 = scalar_select %p46, %s47, %s48
      %p51 = pneg %p46
      %p52 = scmp.eq.s32.totalorder %s14, 1
      %p53 = por %p51, %p52
      %p54 = scmp.ne.s32.totalorder %s47, %s50
      %p55 = scmp.eq.s32.totalorder %s14, 0
      %p56 = por %p54, %p55
      %p57 = scmp.ne.s32.totalorder %s47, %s50
      %p58 = scmp.eq.s32.totalorder %s19, 1
      %p59 = por %p57, %p58
      %p61 = scmp.ne.s32.totalorder %s50, %s60
      %p62 = scmp.eq.s32.totalorder %s19, 0
      %p63 = por %p61, %p62
      %s64 = ssub.s32 %s20, %s30
      %p65 = scmp.eq.s32.totalorder %s64, 0
      %s67 = sadd.s32 %s66, 1
      %s68 = scalar_select %p65, %s66, %s67
      %p70 = pneg %p65
      %p71 = scmp.eq.s32.totalorder %s14, 1
      %p72 = por %p70, %p71
      %p73 = scmp.ne.s32.totalorder %s66, %s69
      %p74 = scmp.eq.s32.totalorder %s14, 0
      %p75 = por %p73, %p74
      %p76 = scmp.ne.s32.totalorder %s66, %s69
      %p77 = scmp.eq.s32.totalorder %s19, 1
      %p78 = por %p76, %p77
      %p80 = scmp.ne.s32.totalorder %s69, %s79
      %p81 = scmp.eq.s32.totalorder %s19, 0
      %p82 = por %p80, %p81
      %p83 = scmp.le.s32.totalorder 1, %s14
      // Predicated region
      $region9: #{tpu_custom_call.1} parent=5 // pred_check
        %p84 = pneg %p83
      $region10: #{tpu_custom_call.1} parent=5 // pred_check_branch
        %86 = sbr.rel (%p84) target = $region12
      $region11: #{tpu_custom_call.1} parent=5 // pred_region
        %s87 = ssub.s32 %s14, 1
        // Predicated region
        $region13: #{tpu_custom_call.1} parent=11 // pred_check
          %p88 = pneg %p44
        $region14: #{tpu_custom_call.1} parent=11 // pred_check_branch
          %90 = sbr.rel (%p88) target = $region16
        $region15: #{tpu_custom_call.1} parent=11 // pred_region
          %s92 = ssub.s32 1024, 1024
          %93 = vsyncadd [#allocation7], %s92
          %s94 = sshll.u32 [#allocation6], 4
          %s95 = int_to_ptr.vmem [resolvable:$true] %s94
          %100 = dma.hbm_to_vmem [thread:$0]  %s0, 1024, %s95, [#allocation7], 64, 64, 4
        $region16: #{tpu_custom_call.1} parent=11 // pred_fallthru
          _
      $region12: #{tpu_custom_call.1} parent=5 // pred_fallthru
        _
      %p101 = scmp.lt.s32.totalorder %s14, 2
      // Predicated region
      $region17: #{tpu_custom_call.1} parent=5 // pred_check
        %p102 = pneg %p101
      $region18: #{tpu_custom_call.1} parent=5 // pred_check_branch
        %104 = sbr.rel (%p102) target = $region20
      $region19: #{tpu_custom_call.1} parent=5 // pred_region
        // Predicated region
        $region21: #{tpu_custom_call.1} parent=19 // pred_check
          %p105 = pneg %p56
        $region22: #{tpu_custom_call.1} parent=19 // pred_check_branch
          %107 = sbr.rel (%p105) target = $region24
        $region23: #{tpu_custom_call.1} parent=19 // pred_region
          %s108 = sand.u32 %s47, 1
          %s109 = scalar_lea.sflag [#allocation9], %s108
          %s110 = sand.u32 %s47, 1
          %s111 = smul.addr %s110, 64
          %s112 = scalar_lea.vmem [#allocation8], %s111
          %s114 = ssub.s32 1024, 1024
          %115 = vsyncadd %s109, %s114
          %s116 = smul.addr %s20, 16
          %s117 = smul.addr %s116, 64
          %s118 = scalar_lea.hbm %s2, %s117
          %s119 = sshll.u32 %s112, 4
          %s120 = int_to_ptr.vmem [resolvable:$true] %s119
          %125 = dma.hbm_to_vmem [thread:$0]  %s118, 1024, %s120, %s109, 64, 64, 4
        $region24: #{tpu_custom_call.1} parent=19 // pred_fallthru
          _
        // Predicated region
        $region25: #{tpu_custom_call.1} parent=19 // pred_check
          %p126 = pneg %p75
        $region26: #{tpu_custom_call.1} parent=19 // pred_check_branch
          %128 = sbr.rel (%p126) target = $region28
        $region27: #{tpu_custom_call.1} parent=19 // pred_region
          %p129 = scmp.lt.s32.totalorder %s20, 1
          %s130 = scalar_select %p129, %s20, 1
          %s131 = scalar_lea.vmem %s3, %s130
        $region28: #{tpu_custom_call.1} parent=19 // pred_fallthru
          _
      $region20: #{tpu_custom_call.1} parent=5 // pred_fallthru
        _
      %p132 = scmp.le.s32.totalorder 1, %s14
      // Predicated region
      $region29: #{tpu_custom_call.1} parent=5 // pred_check
        %p133 = pneg %p132
      $region30: #{tpu_custom_call.1} parent=5 // pred_check_branch
        %135 = sbr.rel (%p133) target = $region32
      $region31: #{tpu_custom_call.1} parent=5 // pred_region
        %s136 = ssub.s32 %s14, 1
        // Predicated region
        $region33: #{tpu_custom_call.1} parent=31 // pred_check
          %p137 = pneg %p44
        $region34: #{tpu_custom_call.1} parent=31 // pred_check_branch
          %139 = sbr.rel (%p137) target = $region36
        $region35: #{tpu_custom_call.1} parent=31 // pred_region
          %140 = dma.done [#allocation7], 1024
        $region36: #{tpu_custom_call.1} parent=31 // pred_fallthru
          _
        %s141 = sand.u32 %s50, 1
        %s142 = scalar_lea.sflag [#allocation9], %s141
        %s143 = sand.u32 %s50, 1
        %s144 = smul.addr %s143, 64
        %s145 = scalar_lea.vmem [#allocation8], %s144
        // Predicated region
        $region37: #{tpu_custom_call.1} parent=31 // pred_check
          %p146 = pneg %p63
        $region38: #{tpu_custom_call.1} parent=31 // pred_check_branch
          %148 = sbr.rel (%p146) target = $region40
        $region39: #{tpu_custom_call.1} parent=31 // pred_region
          %149 = dma.done %s142, 1024
        $region40: #{tpu_custom_call.1} parent=31 // pred_fallthru
          _
        %p150 = pneg %p44
        %p151 = pneg %p40
        %s152 = sand.u32 %s50, 1
        %s153 = scalar_lea.sflag [#allocation9], %s152
        %s154 = sand.u32 %s50, 1
        %s155 = smul.addr %s154, 64
        %s156 = scalar_lea.vmem [#allocation8], %s155
        %p157 = pneg %p63
        %p158 = pneg %p59
        %p159 = scmp.lt.s32.totalorder %s22, 1
        %s160 = scalar_select %p159, %s22, 1
        %s161 = scalar_lea.vmem %s3, %s160
        %p162 = pneg %p82
        %p163 = pneg %p78
        %p164 = scmp.lt.s32.totalorder %s22, 1
        %s165 = scalar_select %p164, %s22, 1
        %s166 = scalar_lea.vmem %s3, %s165
        %s168 = smul.u32 %s23, 128
        %p169 = scmp.eq.s32.totalorder %s22, 0
        %p170 = scmp.eq.s32.totalorder %s23, 0
        %p171 = pnand %p169, %p170
        %p172 = pneg %p171
        // Predicated region
        $region41: #{tpu_custom_call.1} parent=31 // pred_check
          _
        $region42: #{tpu_custom_call.1} parent=31 // pred_check_branch
          %174 = sbr.rel (%p171) target = $region44
        $region43: #{tpu_custom_call.1} parent=31 // pred_region
          // Predicated region
          $region45: #{tpu_custom_call.1} parent=43 // pred_check
            _
          $region46: #{tpu_custom_call.1} parent=43 // pred_check_branch
            %176 = sbr.rel target = $region48
          $region47: #{tpu_custom_call.1} parent=43 // pred_region
            %177 = sst [smem:[#allocation12]] [#allocation11]
            %178 = sst [smem:[#allocation13]] [#allocation10]
          $region48: #{tpu_custom_call.1} parent=43 // pred_fallthru
            _
          %180 = shalt.err (0)
          %s182 = sshll.u32 [#allocation2], 4
          %s183 = int_to_ptr.vmem [resolvable:$true] %s182
          %185 = dma.hbm_to_vmem [thread:$0]  %s1, 1024, %s183, [#allocation5]
          %s186 = smul.u32 4, 16
          %s187 = smul.u32 %s186, 1
          %s188 = sshll.u32 %s187, 4
          %189 = dma.done [#allocation5], %s188
        $region44: #{tpu_custom_call.1} parent=31 // pred_fallthru
          _
        %p190 = scmp.lt.s32.totalorder %s22, 0
        %s191 = ssub.s32 0, %s22
        %s192 = scalar_select %p190, %s191, %s22
        %s193 = sand.u32 %s192, 1
        %s194 = ssub.s32 0, %s193
        %s195 = scalar_select %p190, %s194, %s193
        %p196 = scmp.ne.s32.totalorder %s195, 0
        %p197 = scmp.lt.s32.totalorder %s195, 0
        %p198 = pnand %p197, %p196
        %p199 = pneg %p198
        %s200 = sadd.s32 %s195, 2
        %s201 = scalar_select %p199, %s200, %s195
        %s202 = sadd.s32 %s22, 1
        %p203 = scmp.lt.s32.totalorder %s202, 0
        %s204 = ssub.s32 0, %s202
        %s205 = scalar_select %p203, %s204, %s202
        %s206 = sand.u32 %s205, 1
        %s207 = ssub.s32 0, %s206
        %s208 = scalar_select %p203, %s207, %s206
        %p209 = scmp.ne.s32.totalorder %s208, 0
        %p210 = scmp.lt.s32.totalorder %s208, 0
        %p211 = pnand %p210, %p209
        %p212 = pneg %p211
        %s213 = sadd.s32 %s208, 2
        %s214 = scalar_select %p212, %s213, %s208
        // Predicated region
        $region49: #{tpu_custom_call.1} parent=31 // pred_check
          %p215 = pneg %p170
        $region50: #{tpu_custom_call.1} parent=31 // pred_check_branch
          %217 = sbr.rel (%p215) target = $region52
        $region51: #{tpu_custom_call.1} parent=31 // pred_region
          %s218 = smul.u32 %s201, 8
          %s219 = smul.addr %s218, 8
          %s220 = scalar_lea.vmem [#allocation2], %s219
          %v221 = vld [vmem:[%s220] sm:$0xff]
          %v222 = vld [vmem:[%s220 + $0x8] sm:$0xff]
          %v223 = vld [vmem:[%s220 + $0x10] sm:$0xff]
          %v224 = vld [vmem:[%s220 + $0x18] sm:$0xff]
          %v225 = vld [vmem:[%s220 + $0x20] sm:$0xff]
          %v226 = vld [vmem:[%s220 + $0x28] sm:$0xff]
          %v227 = vld [vmem:[%s220 + $0x30] sm:$0xff]
          %v228 = vld [vmem:[%s220 + $0x38] sm:$0xff]
          %v229 = vld [vmem:[%s145] sm:$0xf]
          %v230 = vld [vmem:[%s145 + $0x4] sm:$0xf]
          %v231 = vld [vmem:[%s145 + $0x8] sm:$0xf]
          %v232 = vld [vmem:[%s145 + $0xc] sm:$0xf]
          %v233 = vld [vmem:[%s145 + $0x10] sm:$0xf]
          %v234 = vld [vmem:[%s145 + $0x14] sm:$0xf]
          %v235 = vld [vmem:[%s145 + $0x18] sm:$0xf]
          %v236 = vld [vmem:[%s145 + $0x1c] sm:$0xf]
          %v237 = vld [vmem:[%s145 + $0x20] sm:$0xf]
          %v238 = vld [vmem:[%s145 + $0x24] sm:$0xf]
          %v239 = vld [vmem:[%s145 + $0x28] sm:$0xf]
          %v240 = vld [vmem:[%s145 + $0x2c] sm:$0xf]
          %v241 = vld [vmem:[%s145 + $0x30] sm:$0xf]
          %v242 = vld [vmem:[%s145 + $0x34] sm:$0xf]
          %v243 = vld [vmem:[%s145 + $0x38] sm:$0xf]
          %v244 = vld [vmem:[%s145 + $0x3c] sm:$0xf]
          %v261 = vunpack.c.l.b16 %v229
          %v262 = vunpack.c.l.b16 %v230
          %v263 = vunpack.c.l.b16 %v231
          %v264 = vunpack.c.l.b16 %v232
          %v265 = vunpack.c.l.b16 %v233
          %v266 = vunpack.c.l.b16 %v234
          %v267 = vunpack.c.l.b16 %v235
          %v268 = vunpack.c.l.b16 %v236
          %v269 = vunpack.c.l.b16 %v237
          %v270 = vunpack.c.l.b16 %v238
          %v271 = vunpack.c.l.b16 %v239
          %v272 = vunpack.c.l.b16 %v240
          %v273 = vunpack.c.l.b16 %v241
          %v274 = vunpack.c.l.b16 %v242
          %v275 = vunpack.c.l.b16 %v243
          %v276 = vunpack.c.l.b16 %v244
          %v277 = vpack.c.b16 %v262, %v261
          %v278 = vpack.c.b16 %v264, %v263
          %v279 = vpack.c.b16 %v266, %v265
          %v280 = vpack.c.b16 %v268, %v267
          %v281 = vpack.c.b16 %v270, %v269
          %v282 = vpack.c.b16 %v272, %v271
          %v283 = vpack.c.b16 %v274, %v273
          %v284 = vpack.c.b16 %v276, %v275
          %293 = vmatprep.subr.bf16.mxu0 0
          %294 = vmatpush1.bf16.msra.mxu0 %v277
          %295 = vmatprep.subr.bf16.mxu0 0
          %296 = vmatpush1.bf16.msra.mxu0 %v278
          %297 = vmatprep.subr.bf16.mxu0 0
          %298 = vmatpush1.bf16.msra.mxu0 %v279
          %299 = vmatprep.subr.bf16.mxu0 0
          %300 = vmatpush1.bf16.msra.mxu0 %v280
          %301 = vmatprep.subr.bf16.mxu0 0
          %302 = vmatpush1.bf16.msra.mxu0 %v281
          %303 = vmatprep.subr.bf16.mxu0 0
          %304 = vmatpush1.bf16.msra.mxu0 %v282
          %305 = vmatprep.subr.bf16.mxu0 0
          %306 = vmatpush1.bf16.msra.mxu0 %v283
          %307 = vmatprep.subr.bf16.mxu0 0
          %308 = vmatpush1.bf16.msra.mxu0 %v284
          %309 = vmatprep.subr.bf16.mxu0 0
          %310 = vmatpush1.bf16.msra.mxu0 0
          %311 = vmatprep.subr.bf16.mxu0 0
          %312 = vmatpush1.bf16.msra.mxu0 0
          %313 = vmatprep.subr.bf16.mxu0 0
          %314 = vmatpush1.bf16.msra.mxu0 0
          %315 = vmatprep.subr.bf16.mxu0 0
          %316 = vmatpush1.bf16.msra.mxu0 0
          %317 = vmatprep.subr.bf16.mxu0 0
          %318 = vmatpush1.bf16.msra.mxu0 0
          %319 = vmatprep.subr.bf16.mxu0 0
          %320 = vmatpush1.bf16.msra.mxu0 0
          %321 = vmatprep.subr.bf16.mxu0 0
          %322 = vmatpush1.bf16.msra.mxu0 0
          %323 = vmatprep.subr.bf16.mxu0 0
          %324 = vmatpush1.bf16.msra.mxu0 0
          %325 = vmatprep.mubr.bf16.mxu0 0
          %326 = vmatmul.mubr.bf16.gmra.mrb[0].mxu0 %v221
          %v327 = vpop.f32.mrb[0].mxu0
          %v328 = vadd.f32 0.0, %v327
          %v329 = vpop.f32.mrb[0].mxu0
          %v330 = vpop.f32.mrb[0].mxu0
          %v331 = vadd.f32 0.0, %v330
          %v332 = vpop.f32.mrb[0].mxu0
          %333 = vmatprep.mubr.bf16.mxu0 0
          %334 = vmatmul.mubr.bf16.gmra.mrb[0].mxu0 %v222
          %v335 = vpop.f32.mrb[0].mxu0
          %v336 = vadd.f32 0.0, %v335
          %v337 = vpop.f32.mrb[0].mxu0
          %v338 = vpop.f32.mrb[0].mxu0
          %v339 = vadd.f32 0.0, %v338
          %v340 = vpop.f32.mrb[0].mxu0
          %341 = vmatprep.mubr.bf16.mxu0 0
          %342 = vmatmul.mubr.bf16.gmra.mrb[0].mxu0 %v223
          %v343 = vpop.f32.mrb[0].mxu0
          %v344 = vadd.f32 0.0, %v343
          %v345 = vpop.f32.mrb[0].mxu0
          %v346 = vpop.f32.mrb[0].mxu0
          %v347 = vadd.f32 0.0, %v346
          %v348 = vpop.f32.mrb[0].mxu0
          %349 = vmatprep.mubr.bf16.mxu0 0
          %350 = vmatmul.mubr.bf16.gmra.mrb[0].mxu0 %v224
          %v351 = vpop.f32.mrb[0].mxu0
          %v352 = vadd.f32 0.0, %v351
          %v353 = vpop.f32.mrb[0].mxu0
          %v354 = vpop.f32.mrb[0].mxu0
          %v355 = vadd.f32 0.0, %v354
          %v356 = vpop.f32.mrb[0].mxu0
          %357 = vmatprep.mubr.bf16.mxu0 0
          %358 = vmatmul.mubr.bf16.gmra.mrb[0].mxu0 %v225
          %v359 = vpop.f32.mrb[0].mxu0
          %v360 = vadd.f32 0.0, %v359
          %v361 = vpop.f32.mrb[0].mxu0
          %v362 = vpop.f32.mrb[0].mxu0
          %v363 = vadd.f32 0.0, %v362
          %v364 = vpop.f32.mrb[0].mxu0
          %365 = vmatprep.mubr.bf16.mxu0 0
          %366 = vmatmul.mubr.bf16.gmra.mrb[0].mxu0 %v226
          %v367 = vpop.f32.mrb[0].mxu0
          %v368 = vadd.f32 0.0, %v367
          %v369 = vpop.f32.mrb[0].mxu0
          %v370 = vpop.f32.mrb[0].mxu0
          %v371 = vadd.f32 0.0, %v370
          %v372 = vpop.f32.mrb[0].mxu0
          %373 = vmatprep.mubr.bf16.mxu0 0
          %374 = vmatmul.mubr.bf16.gmra.mrb[0].mxu0 %v227
          %v375 = vpop.f32.mrb[0].mxu0
          %v376 = vadd.f32 0.0, %v375
          %v377 = vpop.f32.mrb[0].mxu0
          %v378 = vpop.f32.mrb[0].mxu0
          %v379 = vadd.f32 0.0, %v378
          %v380 = vpop.f32.mrb[0].mxu0
          %381 = vmatprep.mubr.bf16.mxu0 0
          %382 = vmatmul.mubr.bf16.gmra.mrb[0].mxu0 %v228
          %v383 = vpop.f32.mrb[0].mxu0
          %v384 = vadd.f32 0.0, %v383
          %v385 = vpop.f32.mrb[0].mxu0
          %v386 = vpop.f32.mrb[0].mxu0
          %v387 = vadd.f32 0.0, %v386
          %v388 = vpop.f32.mrb[0].mxu0
          %389 = vdwg.mxu0
          %v390 = vpack.c.bf16 %v331, %v328
          %v391 = vpack.c.bf16 %v339, %v336
          %v392 = vpack.c.bf16 %v347, %v344
          %v393 = vpack.c.bf16 %v355, %v352
          %v394 = vpack.c.bf16 %v363, %v360
          %v395 = vpack.c.bf16 %v371, %v368
          %v396 = vpack.c.bf16 %v379, %v376
          %v397 = vpack.c.bf16 %v387, %v384
          %398 = vst [vmem:[#allocation3] sm:$0xff] %v390
          %399 = vst [vmem:[#allocation3 + $0x8] sm:$0xff] %v391
          %400 = vst [vmem:[#allocation3 + $0x10] sm:$0xff] %v392
          %401 = vst [vmem:[#allocation3 + $0x18] sm:$0xff] %v393
          %402 = vst [vmem:[#allocation3 + $0x20] sm:$0xff] %v394
          %403 = vst [vmem:[#allocation3 + $0x28] sm:$0xff] %v395
          %404 = vst [vmem:[#allocation3 + $0x30] sm:$0xff] %v396
          %405 = vst [vmem:[#allocation3 + $0x38] sm:$0xff] %v397
        $region52: #{tpu_custom_call.1} parent=31 // pred_fallthru
          _
        %s406 = sshra.s32 %s168, 3
        %s407 = sand.u32 %s168, 7
        %s408 = smul.addr %s406, 4
        %s409 = scalar_lea.vmem [#allocation6], %s408
        %v410 = vld [vmem:[%s409] sm:$0xf]
        %v411 = vld [vmem:[%s409 + $0x4] sm:$0xf]
        %v412 = vld [vmem:[%s409 + $0x8] sm:$0xf]
        %v413 = vld [vmem:[%s409 + $0xc] sm:$0xf]
        %v414 = vld [vmem:[%s409 + $0x10] sm:$0xf]
        %v415 = vld [vmem:[%s409 + $0x14] sm:$0xf]
        %v416 = vld [vmem:[%s409 + $0x18] sm:$0xf]
        %v417 = vld [vmem:[%s409 + $0x1c] sm:$0xf]
        %v418 = vld [vmem:[%s409 + $0x20] sm:$0xf]
        %v419 = vld [vmem:[%s409 + $0x24] sm:$0xf]
        %v420 = vld [vmem:[%s409 + $0x28] sm:$0xf]
        %v421 = vld [vmem:[%s409 + $0x2c] sm:$0xf]
        %v422 = vld [vmem:[%s409 + $0x30] sm:$0xf]
        %v423 = vld [vmem:[%s409 + $0x34] sm:$0xf]
        %v424 = vld [vmem:[%s409 + $0x38] sm:$0xf]
        %v425 = vld [vmem:[%s409 + $0x3c] sm:$0xf]
        %v426 = vld [vmem:[#allocation3] sm:$0xff]
        %v427 = vld [vmem:[#allocation3 + $0x8] sm:$0xff]
        %v428 = vld [vmem:[#allocation3 + $0x10] sm:$0xff]
        %v429 = vld [vmem:[#allocation3 + $0x18] sm:$0xff]
        %v430 = vld [vmem:[#allocation3 + $0x20] sm:$0xff]
        %v431 = vld [vmem:[#allocation3 + $0x28] sm:$0xff]
        %v432 = vld [vmem:[#allocation3 + $0x30] sm:$0xff]
        %v433 = vld [vmem:[#allocation3 + $0x38] sm:$0xff]
        %v434 = vld [vmem:[%s166] sm:$0x1]
        %v436 = vlaneseq
        %v437 = vshrl.u32 %v436, 7
        %v438 = vsub.s32 0, %v437
        %v439 = vrot.slane %v434, %v438
        %v457 = vunpack.c.l.b16 %v410
        %v458 = vunpack.c.l.b16 %v411
        %v459 = vunpack.c.l.b16 %v412
        %v460 = vunpack.c.l.b16 %v413
        %v461 = vunpack.c.l.b16 %v414
        %v462 = vunpack.c.l.b16 %v415
        %v463 = vunpack.c.l.b16 %v416
        %v464 = vunpack.c.l.b16 %v417
        %v465 = vunpack.c.l.b16 %v418
        %v466 = vunpack.c.l.b16 %v419
        %v467 = vunpack.c.l.b16 %v420
        %v468 = vunpack.c.l.b16 %v421
        %v469 = vunpack.c.l.b16 %v422
        %v470 = vunpack.c.l.b16 %v423
        %v471 = vunpack.c.l.b16 %v424
        %v472 = vunpack.c.l.b16 %v425
        %v473 = vpack.c.b16 %v458, %v457
        %v474 = vpack.c.b16 %v460, %v459
        %v475 = vpack.c.b16 %v462, %v461
        %v476 = vpack.c.b16 %v464, %v463
        %v477 = vpack.c.b16 %v466, %v465
        %v478 = vpack.c.b16 %v468, %v467
        %v479 = vpack.c.b16 %v470, %v469
        %v480 = vpack.c.b16 %v472, %v471
        %489 = vmatprep.subr.bf16.mxu0 0
        %490 = vmatpush1.bf16.msra.mxu0 %v426
        %491 = vmatprep.subr.bf16.mxu0 0
        %492 = vmatpush1.bf16.msra.mxu0 %v427
        %493 = vmatprep.subr.bf16.mxu0 0
        %494 = vmatpush1.bf16.msra.mxu0 %v428
        %495 = vmatprep.subr.bf16.mxu0 0
        %496 = vmatpush1.bf16.msra.mxu0 %v429
        %497 = vmatprep.subr.bf16.mxu0 0
        %498 = vmatpush1.bf16.msra.mxu0 %v430
        %499 = vmatprep.subr.bf16.mxu0 0
        %500 = vmatpush1.bf16.msra.mxu0 %v431
        %501 = vmatprep.subr.bf16.mxu0 0
        %502 = vmatpush1.bf16.msra.mxu0 %v432
        %503 = vmatprep.subr.bf16.mxu0 0
        %504 = vmatpush1.bf16.msra.mxu0 %v433
        %505 = vmatprep.subr.bf16.mxu0 0
        %506 = vmatpush1.bf16.msra.mxu0 0
        %507 = vmatprep.subr.bf16.mxu0 0
        %508 = vmatpush1.bf16.msra.mxu0 0
        %509 = vmatprep.subr.bf16.mxu0 0
        %510 = vmatpush1.bf16.msra.mxu0 0
        %511 = vmatprep.subr.bf16.mxu0 0
        %512 = vmatpush1.bf16.msra.mxu0 0
        %513 = vmatprep.subr.bf16.mxu0 0
        %514 = vmatpush1.bf16.msra.mxu0 0
        %515 = vmatprep.subr.bf16.mxu0 0
        %516 = vmatpush1.bf16.msra.mxu0 0
        %517 = vmatprep.subr.bf16.mxu0 0
        %518 = vmatpush1.bf16.msra.mxu0 0
        %519 = vmatprep.subr.bf16.mxu0 0
        %520 = vmatpush1.bf16.msra.mxu0 0
        %521 = vmatprep.mubr.bf16.mxu0 0
        %522 = vmatmul.mubr.bf16.gmra.mrb[0].mxu0 %v473
        %v523 = vpop.f32.mrb[0].mxu0
        %v524 = vadd.f32 %v439, %v523
        %v525 = vpop.f32.mrb[0].mxu0
        %v526 = vpop.f32.mrb[0].mxu0
        %v527 = vadd.f32 %v439, %v526
        %v528 = vpop.f32.mrb[0].mxu0
        %529 = vmatprep.mubr.bf16.mxu0 0
        %530 = vmatmul.mubr.bf16.gmra.mrb[0].mxu0 %v474
        %v531 = vpop.f32.mrb[0].mxu0
        %v532 = vadd.f32 %v439, %v531
        %v533 = vpop.f32.mrb[0].mxu0
        %v534 = vpop.f32.mrb[0].mxu0
        %v535 = vadd.f32 %v439, %v534
        %v536 = vpop.f32.mrb[0].mxu0
        %537 = vmatprep.mubr.bf16.mxu0 0
        %538 = vmatmul.mubr.bf16.gmra.mrb[0].mxu0 %v475
        %v539 = vpop.f32.mrb[0].mxu0
        %v540 = vadd.f32 %v439, %v539
        %v541 = vpop.f32.mrb[0].mxu0
        %v542 = vpop.f32.mrb[0].mxu0
        %v543 = vadd.f32 %v439, %v542
        %v544 = vpop.f32.mrb[0].mxu0
        %545 = vmatprep.mubr.bf16.mxu0 0
        %546 = vmatmul.mubr.bf16.gmra.mrb[0].mxu0 %v476
        %v547 = vpop.f32.mrb[0].mxu0
        %v548 = vadd.f32 %v439, %v547
        %v549 = vpop.f32.mrb[0].mxu0
        %v550 = vpop.f32.mrb[0].mxu0
        %v551 = vadd.f32 %v439, %v550
        %v552 = vpop.f32.mrb[0].mxu0
        %553 = vmatprep.mubr.bf16.mxu0 0
        %554 = vmatmul.mubr.bf16.gmra.mrb[0].mxu0 %v477
        %v555 = vpop.f32.mrb[0].mxu0
        %v556 = vadd.f32 %v439, %v555
        %v557 = vpop.f32.mrb[0].mxu0
        %v558 = vpop.f32.mrb[0].mxu0
        %v559 = vadd.f32 %v439, %v558
        %v560 = vpop.f32.mrb[0].mxu0
        %561 = vmatprep.mubr.bf16.mxu0 0
        %562 = vmatmul.mubr.bf16.gmra.mrb[0].mxu0 %v478
        %v563 = vpop.f32.mrb[0].mxu0
        %v564 = vadd.f32 %v439, %v563
        %v565 = vpop.f32.mrb[0].mxu0
        %v566 = vpop.f32.mrb[0].mxu0
        %v567 = vadd.f32 %v439, %v566
        %v568 = vpop.f32.mrb[0].mxu0
        %569 = vmatprep.mubr.bf16.mxu0 0
        %570 = vmatmul.mubr.bf16.gmra.mrb[0].mxu0 %v479
        %v571 = vpop.f32.mrb[0].mxu0
        %v572 = vadd.f32 %v439, %v571
        %v573 = vpop.f32.mrb[0].mxu0
        %v574 = vpop.f32.mrb[0].mxu0
        %v575 = vadd.f32 %v439, %v574
        %v576 = vpop.f32.mrb[0].mxu0
        %577 = vmatprep.mubr.bf16.mxu0 0
        %578 = vmatmul.mubr.bf16.gmra.mrb[0].mxu0 %v480
        %v579 = vpop.f32.mrb[0].mxu0
        %v580 = vadd.f32 %v439, %v579
        %v581 = vpop.f32.mrb[0].mxu0
        %v582 = vpop.f32.mrb[0].mxu0
        %v583 = vadd.f32 %v439, %v582
        %v584 = vpop.f32.mrb[0].mxu0
        %585 = vdwg.mxu0
        %p586 = scmp.lt.s32.totalorder %s22, 1
        // Predicated region
        $region53: #{tpu_custom_call.1} parent=31 // pred_check
          %p587 = pneg %p586
        $region54: #{tpu_custom_call.1} parent=31 // pred_check_branch
          %589 = sbr.rel (%p587) target = $region56
        $region55: #{tpu_custom_call.1} parent=31 // pred_region
          %v590 = vmax.f32 %v524, 0.0
          %v591 = vmax.f32 %v527, 0.0
          %v592 = vmax.f32 %v532, 0.0
          %v593 = vmax.f32 %v535, 0.0
          %v594 = vmax.f32 %v540, 0.0
          %v595 = vmax.f32 %v543, 0.0
          %v596 = vmax.f32 %v548, 0.0
          %v597 = vmax.f32 %v551, 0.0
          %v598 = vmax.f32 %v556, 0.0
          %v599 = vmax.f32 %v559, 0.0
          %v600 = vmax.f32 %v564, 0.0
          %v601 = vmax.f32 %v567, 0.0
          %v602 = vmax.f32 %v572, 0.0
          %v603 = vmax.f32 %v575, 0.0
          %v604 = vmax.f32 %v580, 0.0
          %v605 = vmax.f32 %v583, 0.0
          %v606 = vpack.c.bf16 %v591, %v590
          %v607 = vpack.c.bf16 %v593, %v592
          %v608 = vpack.c.bf16 %v595, %v594
          %v609 = vpack.c.bf16 %v597, %v596
          %v610 = vpack.c.bf16 %v599, %v598
          %v611 = vpack.c.bf16 %v601, %v600
          %v612 = vpack.c.bf16 %v603, %v602
          %v613 = vpack.c.bf16 %v605, %v604
          %s614 = sshra.s32 %s168, 4
          %s615 = sand.u32 %s168, 15
          %s616 = smul.u32 %s214, 8
          %s617 = sadd.s32 %s614, %s616
          %s618 = smul.addr %s617, 8
          %s619 = scalar_lea.vmem [#allocation2], %s618
          %620 = vst [vmem:[%s619] sm:$0xff] %v606
          %621 = vst [vmem:[%s619 + $0x8] sm:$0xff] %v607
          %622 = vst [vmem:[%s619 + $0x10] sm:$0xff] %v608
          %623 = vst [vmem:[%s619 + $0x18] sm:$0xff] %v609
          %624 = vst [vmem:[%s619 + $0x20] sm:$0xff] %v610
          %625 = vst [vmem:[%s619 + $0x28] sm:$0xff] %v611
          %626 = vst [vmem:[%s619 + $0x30] sm:$0xff] %v612
          %627 = vst [vmem:[%s619 + $0x38] sm:$0xff] %v613
        $region56: #{tpu_custom_call.1} parent=31 // pred_fallthru
          _
        %p628 = scmp.eq.s32.totalorder %s22, 1
        // Predicated region
        $region57: #{tpu_custom_call.1} parent=31 // pred_check
          %p629 = pneg %p628
        $region58: #{tpu_custom_call.1} parent=31 // pred_check_branch
          %631 = sbr.rel (%p629) target = $region60
        $region59: #{tpu_custom_call.1} parent=31 // pred_region
          %632 = vst [vmem:[#allocation4] sm:$0xff] %v524
          %633 = vst [vmem:[#allocation4 + $0x8] sm:$0xff] %v527
          %634 = vst [vmem:[#allocation4 + $0x10] sm:$0xff] %v532
          %635 = vst [vmem:[#allocation4 + $0x18] sm:$0xff] %v535
          %636 = vst [vmem:[#allocation4 + $0x20] sm:$0xff] %v540
          %637 = vst [vmem:[#allocation4 + $0x28] sm:$0xff] %v543
          %638 = vst [vmem:[#allocation4 + $0x30] sm:$0xff] %v548
          %639 = vst [vmem:[#allocation4 + $0x38] sm:$0xff] %v551
          %640 = vst [vmem:[#allocation4 + $0x40] sm:$0xff] %v556
          %641 = vst [vmem:[#allocation4 + $0x48] sm:$0xff] %v559
          %642 = vst [vmem:[#allocation4 + $0x50] sm:$0xff] %v564
          %643 = vst [vmem:[#allocation4 + $0x58] sm:$0xff] %v567
          %644 = vst [vmem:[#allocation4 + $0x60] sm:$0xff] %v572
          %645 = vst [vmem:[#allocation4 + $0x68] sm:$0xff] %v575
          %646 = vst [vmem:[#allocation4 + $0x70] sm:$0xff] %v580
          %647 = vst [vmem:[#allocation4 + $0x78] sm:$0xff] %v583
          %s648 = smul.addr %s168, 16
          %s649 = scalar_lea.hbm %s4, %s648
          %s650 = scalar_lea.sflag [#allocation5], 1
          // Predicated region
          $region61: #{tpu_custom_call.1} parent=59 // pred_check
            _
          $region62: #{tpu_custom_call.1} parent=59 // pred_check_branch
            %652 = sbr.rel target = $region64
          $region63: #{tpu_custom_call.1} parent=59 // pred_region
            %653 = sst [smem:[#allocation12]] [#allocation15]
            %654 = sst [smem:[#allocation13]] [#allocation14]
          $region64: #{tpu_custom_call.1} parent=59 // pred_fallthru
            _
          %656 = shalt.err (0)
          %s658 = sshll.u32 [#allocation4], 4
          %s659 = int_to_ptr.vmem [resolvable:$true] %s658
          %661 = dma.vmem_to_hbm [thread:$0]  %s659, 2048, %s649, %s650
          %s662 = smul.u32 128, 1
          %s663 = sshll.u32 %s662, 4
          %664 = dma.done %s650, %s663
        $region60: #{tpu_custom_call.1} parent=31 // pred_fallthru
          _
      $region32: #{tpu_custom_call.1} parent=5 // pred_fallthru
        _
    $region6: #{tpu_custom_call.1} parent=1 // loop_footer
      %s18 = sadd.s32 1, %s14
    $region7: #{tpu_custom_call.1} parent=1 // loop_footer_branch
      %13 = sbr.rel target = $region3
    $region8: #{tpu_custom_call.1} parent=1 // loop_exit
      _
    %665 = vsyncpa [#allocation7], 1
    %s666 = scalar_lea.sflag [#allocation7], 1
    %667 = vsyncpa %s666, 1
    %668 = vsyncpa [#allocation9], 1
    %s669 = scalar_lea.sflag [#allocation9], 1
    %670 = vsyncpa %s669, 1
  %671 = vsyncmov [#allocation5]
  %s672 = vpop.sfrf %671
  %p673 = scmp.eq.s32.totalorder %s672, 0
  %p674 = pneg %p673
  %676 = shalt.err (%p674)
  %s677 = scalar_lea.sflag [#allocation5], 1
  %678 = vsyncmov %s677
  %s679 = vpop.sfrf %678
  %p680 = scmp.eq.s32.totalorder %s679, 0
  %p681 = pneg %p680
  %683 = shalt.err (%p681)

</llo_original>
